<compile_context>
chip_gen: v5e
topology: v5e:2x2
jax: 0.10.0
libtpu: 0.0.40
codegen_flags: <defaults>
</compile_context>

<pallas_src>
import functools

import jax
import jax.numpy as jnp
from jax.experimental import pallas as pl
from jax.experimental.pallas import tpu as pltpu

_LANES = 128
_ACC_ROWS = 32                            # (32,128) accumulator: 4 vreg chains
_TARGET_BLOCK_BYTES = 4 * 1024 * 1024     # per-input-buffer DMA chunk


def _pixel_loss_kernel(x_ref, *rest, loss_type, has_target, rows_valid,
                       block_rows, blocks_per_core, needs_mask):
    if has_target:
        t_ref, out_ref, acc_ref = rest
    else:
        t_ref = None
        out_ref, acc_ref = rest

    c = pl.program_id(0)   # parallel axis (megacore split on v7x)
    j = pl.program_id(1)   # streaming / reduction axis

    @pl.when(j == 0)
    def _():
        acc_ref[...] = jnp.zeros_like(acc_ref)

    x = x_ref[...].astype(jnp.float32)
    if has_target:
        d = x - t_ref[...].astype(jnp.float32)
    else:
        d = x  # target defaults to zeros_like(pred)

    # Static (trace-time) branch on loss configuration — mirrors PixelLoss.
    if loss_type == 'l1':
        v = jnp.abs(d)
    elif loss_type == 'mse':
        v = d * d
    elif loss_type in ('smooth_l1', 'huber'):
        # PyTorch defaults beta = delta = 1.0 -> identical piecewise form.
        ad = jnp.abs(d)
        v = jnp.where(ad < 1.0, 0.5 * d * d, ad - 0.5)
    else:
        raise ValueError(f'invalid loss type: {loss_type}')

    br, lanes = v.shape

    def _accum(vals):
        # VPU-only partial sums into a (32,128) accumulator: the single
        # cross-lane/sublane reduction is deferred to the very last step.
        acc_ref[...] += vals.reshape(br // _ACC_ROWS, _ACC_ROWS, lanes).sum(axis=0)

    if needs_mask:
        # Only the final (or clamped-overhang) block is ragged.  Scalar-gate
        # the mask so every full block pays zero VALU for it.
        block_start = (c * blocks_per_core + j) * block_rows
        is_full = block_start + block_rows <= rows_valid

        @pl.when(is_full)
        def _():
            _accum(v)

        @pl.when(jnp.logical_not(is_full))
        def _():
            limit = rows_valid - block_start          # may be <= 0 for overhang
            row = jax.lax.broadcasted_iota(jnp.int32, (br, lanes), 0)
            _accum(jnp.where(row < limit, v, 0.0))
    else:
        _accum(v)

    @pl.when(j == pl.num_programs(1) - 1)
    def _():
        # Collapse (32,128) -> (8,128) per core; final scalar combine happens
        # in the wrapper (lane-dense output block).
        out_ref[...] = acc_ref[...].reshape(_ACC_ROWS // 8, 8, lanes).sum(axis=0)[None]


def pixel_loss(pred, target=None, loss_type='l1', reduction='mean',
               block_bytes=_TARGET_BLOCK_BYTES):
    """Pallas implementation of PixelLoss.forward.

    `pred` / `target` are arrays (target may be None -> zeros).  `loss_type`
    and `reduction` are static Python strings.  Returns a scalar f32 loss.
    """
    assert loss_type in ('l1', 'smooth_l1', 'huber', 'mse')
    assert reduction in ('mean', 'sum')

    n = int(pred.size)
    batch = int(pred.shape[0])
    scale = (1.0 / float(n)) if reduction == 'mean' else (1.0 / float(batch))

    has_target = target is not None

    flat = jnp.ravel(pred)                       # bitcast reshape, no copy
    t_flat = jnp.ravel(target) if has_target else None

    rem = n % _LANES
    if rem:
        # TODO(synk): sizes not divisible by 128 still pay one whole-array pad
        # copy; a manual 1-D DMA path (memory_space=pl.ANY) would remove it.
        # The pad is only up to the next 128-lane boundary and is zeros, which
        # every supported loss maps to 0.
        pad = _LANES - rem
        flat = jnp.pad(flat, (0, pad))
        if has_target:
            t_flat = jnp.pad(t_flat, (0, pad))

    rows = pl.cdiv(n, _LANES)                    # valid rows (last may be zero-padded)

    # Dtype-aware block sizing: constant DMA chunk bytes across dtypes.
    itemsize = jnp.dtype(flat.dtype).itemsize
    block_rows = block_bytes // (_LANES * itemsize)
    block_rows = max(_ACC_ROWS, (block_rows // _ACC_ROWS) * _ACC_ROWS)
    block_rows = min(block_rows, pl.cdiv(rows, _ACC_ROWS) * _ACC_ROWS)

    grid_n = pl.cdiv(rows, block_rows)
    num_cores = 2 if grid_n >= 2 else 1          # v7x 2-TC split; sequential elsewhere
    bpc = pl.cdiv(grid_n, num_cores)             # blocks per core
    needs_mask = (rows % block_rows != 0) or (num_cores * bpc != grid_n)

    x2d = flat.reshape(rows, _LANES)             # bitcast reshape, no copy

    def in_map(c, j):
        # Clamp so the (at most one) overhang step of the 2-core split never
        # issues an out-of-bounds DMA; its contribution is masked to zero.
        return (jnp.minimum(c * bpc + j, grid_n - 1), 0)

    inputs = [x2d]
    in_specs = [pl.BlockSpec((block_rows, _LANES), in_map)]
    if has_target:
        inputs.append(t_flat.reshape(rows, _LANES))
        in_specs.append(pl.BlockSpec((block_rows, _LANES), in_map))

    kernel = functools.partial(
        _pixel_loss_kernel,
        loss_type=loss_type,
        has_target=has_target,
        rows_valid=rows,
        block_rows=block_rows,
        blocks_per_core=bpc,
        needs_mask=needs_mask,
    )

    partials = pl.pallas_call(
        kernel,
        out_shape=jax.ShapeDtypeStruct((num_cores, 8, _LANES), jnp.float32),
        grid_spec=pltpu.PrefetchScalarGridSpec(
            num_scalar_prefetch=0,
            grid=(num_cores, bpc),
            in_specs=in_specs,
            out_specs=pl.BlockSpec((1, 8, _LANES), lambda c, j: (c, 0, 0)),
            scratch_shapes=[pltpu.VMEM((_ACC_ROWS, _LANES), jnp.float32)],
        ),
        compiler_params=pltpu.CompilerParams(
            dimension_semantics=("parallel", "arbitrary"),
            vmem_limit_bytes=32 * 1024 * 1024),
    )(*inputs)

    # Tiny per-core combine + scale (num_cores*8*128 elements) in plain JAX.
    return jnp.sum(partials) * jnp.float32(scale)


def _pixel_loss_ref(pred, target, loss_type, reduction):
    """Pure-JAX reference mirroring the PyTorch semantics."""
    if target is None:
        target = jnp.zeros_like(pred)
    d = pred.astype(jnp.float32) - target.astype(jnp.float32)
    if loss_type == 'l1':
        v = jnp.abs(d)
    elif loss_type == 'mse':
        v = d * d
    else:  # smooth_l1 / huber with default beta = delta = 1.0
        ad = jnp.abs(d)
        v = jnp.where(ad < 1.0, 0.5 * d * d, ad - 0.5)
    if reduction == 'mean':
        return jnp.mean(v)
    return jnp.sum(v) / pred.shape[0]


if __name__ == "__main__":
    key = jax.random.PRNGKey(0)
    ks = jax.random.split(key, 10)

    # Small shapes consistent with an image-restoration module (NCHW).
    pred = 2.0 * jax.random.normal(ks[0], (2, 4, 16, 16), dtype=jnp.float32)
    target = jax.random.normal(ks[1], (2, 4, 16, 16), dtype=jnp.float32)
    # Odd-sized input (n % 128 != 0): exercises the minimal-pad path.
    pred_odd = 2.0 * jax.random.normal(ks[2], (2, 3, 33, 17), dtype=jnp.float32)
    target_odd = jax.random.normal(ks[3], (2, 3, 33, 17), dtype=jnp.float32)
    # bf16 inputs: exercises native-dtype DMA + in-kernel cast.
    pred_bf = (2.0 * jax.random.normal(ks[4], (2, 4, 32, 32))).astype(jnp.bfloat16)
    target_bf = jax.random.normal(ks[5], (2, 4, 32, 32)).astype(jnp.bfloat16)
    # Small tensors with a reduced block size: exercise the multi-block
    # streaming loop + 2-way parallel split (aligned and ragged variants).
    pred_m1 = 2.0 * jax.random.normal(ks[6], (2, 8, 64, 128), dtype=jnp.float32)
    target_m1 = jax.random.normal(ks[7], (2, 8, 64, 128), dtype=jnp.float32)
    pred_m2 = 2.0 * jax.random.normal(ks[8], (2, 8, 65, 128), dtype=jnp.float32)
    target_m2 = jax.random.normal(ks[9], (2, 8, 65, 128), dtype=jnp.float32)

    cases = [
        (pred, target, {}),
        (pred, None, {}),
        (pred_odd, target_odd, {}),
        (pred_bf, target_bf, {}),
        (pred_m1, target_m1, dict(block_bytes=64 * 1024)),
        (pred_m2, target_m2, dict(block_bytes=64 * 1024)),
    ]

    ok = True
    for loss_type in ('l1', 'smooth_l1', 'huber', 'mse'):
        for reduction in ('mean', 'sum'):
            for p, t, kw in cases:
                got = pixel_loss(p, t, loss_type=loss_type,
                                 reduction=reduction, **kw)
                got = jax.block_until_ready(got)
                want = _pixel_loss_ref(p, t, loss_type, reduction)
                if not jnp.allclose(got, want, rtol=1e-4, atol=1e-5):
                    ok = False
                    print(f"MISMATCH {loss_type} red={reduction} "
                          f"target={'None' if t is None else 'arr'} "
                          f"shape={p.shape} kw={kw}: {got} vs {want}")
    if ok:
        print("KERNEL_OK")
</pallas_src>

<mosaic_0001>
module attributes {stable_mosaic.version = 11 : i64} {
  func.func @_pixel_loss_kernel(%arg0: i32, %arg1: i32, %arg2: memref<32x128xf32, #tpu.memory_space<vmem>>, %arg3: memref<32x128xf32, #tpu.memory_space<vmem>>, %arg4: memref<1x8x128xf32, #tpu.memory_space<vmem>>, %arg5: memref<32x128xf32, #tpu.memory_space<vmem>>) attributes {dimension_semantics = [#tpu.dimension_semantics<parallel>, #tpu.dimension_semantics<arbitrary>], iteration_bounds = array<i64: 1, 1>, scalar_prefetch = 0 : i64, scratch_operands = 1 : i64, tpu.core_type = #tpu.core_type<tc>, window_params = [{transform_indices = @transform_0, window_bounds = array<i64: 32, 128>}, {transform_indices = @transform_1, window_bounds = array<i64: 32, 128>}, {transform_indices = @transform_2, window_bounds = array<i64: 1, 8, 128>}]} {
    %c0_i32 = arith.constant 0 : i32
    %0 = arith.cmpi eq, %arg1, %c0_i32 : i32
    %1 = arith.extui %0 : i1 to i32
    %c0_i32_0 = arith.constant 0 : i32
    %2 = arith.cmpi ne, %1, %c0_i32_0 : i32
    scf.if %2 {
      %cst = arith.constant 0.000000e+00 : f32
      %20 = vector.broadcast %cst : f32 to vector<32x128xf32>
      %c0_9 = arith.constant 0 : index
      %c0_10 = arith.constant 0 : index
      %21 = vector.load %arg5[%c0_9, %c0_10] : memref<32x128xf32, #tpu.memory_space<vmem>>, vector<32x128xf32>
      tpu.vector_store %arg5[%c0_9, %c0_10], %20 {strides = array<i32>} : memref<32x128xf32, #tpu.memory_space<vmem>>, vector<32x128xf32>,
    } else {
    }
    %c0 = arith.constant 0 : index
    %c0_1 = arith.constant 0 : index
    %3 = vector.load %arg2[%c0, %c0_1] : memref<32x128xf32, #tpu.memory_space<vmem>>, vector<32x128xf32>
    %c0_2 = arith.constant 0 : index
    %c0_3 = arith.constant 0 : index
    %4 = vector.load %arg3[%c0_2, %c0_3] : memref<32x128xf32, #tpu.memory_space<vmem>>, vector<32x128xf32>
    %5 = arith.subf %3, %4 : vector<32x128xf32>
    %6 = math.absf %5 : vector<32x128xf32>
    %c1_i32 = arith.constant 1 : i32
    %7 = arith.muli %arg0, %c1_i32 : i32
    %8 = arith.addi %7, %arg1 : i32
    %c32_i32 = arith.constant 32 : i32
    %9 = arith.muli %8, %c32_i32 : i32
    %c32_i32_4 = arith.constant 32 : i32
    %10 = arith.addi %9, %c32_i32_4 : i32
    %c16_i32 = arith.constant 16 : i32
    %11 = arith.cmpi sle, %10, %c16_i32 : i32
    %12 = arith.extui %11 : i1 to i32
    %c0_i32_5 = arith.constant 0 : i32
    %13 = arith.cmpi ne, %12, %c0_i32_5 : i32
    scf.if %13 {
      %c0_9 = arith.constant 0 : index
      %c0_10 = arith.constant 0 : index
      %20 = vector.load %arg5[%c0_9, %c0_10] : memref<32x128xf32, #tpu.memory_space<vmem>>, vector<32x128xf32>
      %21 = vector.shape_cast %6 : vector<32x128xf32> to vector<1x32x128xf32>
      %cst = arith.constant dense<0.000000e+00> : vector<32x128xf32>
      %22 = vector.multi_reduction <add>, %21, %cst [0] : vector<1x32x128xf32> to vector<32x128xf32>
      %23 = arith.addf %20, %22 : vector<32x128xf32>
      %c0_11 = arith.constant 0 : index
      %c0_12 = arith.constant 0 : index
      %24 = vector.load %arg5[%c0_11, %c0_12] : memref<32x128xf32, #tpu.memory_space<vmem>>, vector<32x128xf32>
      tpu.vector_store %arg5[%c0_11, %c0_12], %23 {strides = array<i32>} : memref<32x128xf32, #tpu.memory_space<vmem>>, vector<32x128xf32>,
    } else {
    }
    %true = arith.constant true
    %14 = arith.xori %11, %true : i1
    %15 = arith.extui %14 : i1 to i32
    %c0_i32_6 = arith.constant 0 : i32
    %16 = arith.cmpi ne, %15, %c0_i32_6 : i32
    scf.if %16 {
      %c16_i32_9 = arith.constant 16 : i32
      %20 = arith.subi %c16_i32_9, %9 : i32
      %21 = tpu.iota {dimensions = array<i32: 0>} : vector<32x128xi32>
      %22 = vector.broadcast %20 : i32 to vector<32x128xi32>
      %23 = arith.cmpi slt, %21, %22 : vector<32x128xi32>
      %cst = arith.constant 0.000000e+00 : f32
      %24 = vector.broadcast %cst : f32 to vector<32x128xf32>
      %25 = arith.select %23, %6, %24 : vector<32x128xi1>, vector<32x128xf32>
      %c0_10 = arith.constant 0 : index
      %c0_11 = arith.constant 0 : index
      %26 = vector.load %arg5[%c0_10, %c0_11] : memref<32x128xf32, #tpu.memory_space<vmem>>, vector<32x128xf32>
      %27 = vector.shape_cast %25 : vector<32x128xf32> to vector<1x32x128xf32>
      %cst_12 = arith.constant dense<0.000000e+00> : vector<32x128xf32>
      %28 = vector.multi_reduction <add>, %27, %cst_12 [0] : vector<1x32x128xf32> to vector<32x128xf32>
      %29 = arith.addf %26, %28 : vector<32x128xf32>
      %c0_13 = arith.constant 0 : index
      %c0_14 = arith.constant 0 : index
      %30 = vector.load %arg5[%c0_13, %c0_14] : memref<32x128xf32, #tpu.memory_space<vmem>>, vector<32x128xf32>
      tpu.vector_store %arg5[%c0_13, %c0_14], %29 {strides = array<i32>} : memref<32x128xf32, #tpu.memory_space<vmem>>, vector<32x128xf32>,
    } else {
    }
    %c0_i32_7 = arith.constant 0 : i32
    %17 = arith.cmpi eq, %arg1, %c0_i32_7 : i32
    %18 = arith.extui %17 : i1 to i32
    %c0_i32_8 = arith.constant 0 : i32
    %19 = arith.cmpi ne, %18, %c0_i32_8 : i32
    scf.if %19 {
      %c0_9 = arith.constant 0 : index
      %c0_10 = arith.constant 0 : index
      %20 = vector.load %arg5[%c0_9, %c0_10] : memref<32x128xf32, #tpu.memory_space<vmem>>, vector<32x128xf32>
      %21 = vector.shape_cast %20 : vector<32x128xf32> to vector<4x8x128xf32>
      %cst = arith.constant dense<0.000000e+00> : vector<8x128xf32>
      %22 = vector.multi_reduction <add>, %21, %cst [0] : vector<4x8x128xf32> to vector<8x128xf32>
      %23 = vector.shape_cast %22 : vector<8x128xf32> to vector<1x8x128xf32>
      %c0_11 = arith.constant 0 : index
      %c0_12 = arith.constant 0 : index
      %c0_13 = arith.constant 0 : index
      %24 = vector.load %arg4[%c0_11, %c0_12, %c0_13] : memref<1x8x128xf32, #tpu.memory_space<vmem>>, vector<1x8x128xf32>
      tpu.vector_store %arg4[%c0_11, %c0_12, %c0_13], %23 {strides = array<i32>} : memref<1x8x128xf32, #tpu.memory_space<vmem>>, vector<1x8x128xf32>,
    } else {
    }
    return
  }
  func.func @transform_0(%arg0: i32, %arg1: i32) -> (i32, i32) {
    %c1_i32 = arith.constant 1 : i32
    %0 = arith.muli %arg0, %c1_i32 : i32
    %1 = arith.addi %0, %arg1 : i32
    %c0_i32 = arith.constant 0 : i32
    %2 = arith.minsi %1, %c0_i32 : i32
    %c0_i32_0 = arith.constant 0 : i32
    %c0_i32_1 = arith.constant 0 : i32
    return %2, %c0_i32_0 : i32, i32
  }
  func.func @transform_1(%arg0: i32, %arg1: i32) -> (i32, i32) {
    %c1_i32 = arith.constant 1 : i32
    %0 = arith.muli %arg0, %c1_i32 : i32
    %1 = arith.addi %0, %arg1 : i32
    %c0_i32 = arith.constant 0 : i32
    %2 = arith.minsi %1, %c0_i32 : i32
    %c0_i32_0 = arith.constant 0 : i32
    %c0_i32_1 = arith.constant 0 : i32
    return %2, %c0_i32_0 : i32, i32
  }
  func.func @transform_2(%arg0: i32, %arg1: i32) -> (i32, i32, i32) {
    %c0_i32 = arith.constant 0 : i32
    %c0_i32_0 = arith.constant 0 : i32
    %c0_i32_1 = arith.constant 0 : i32
    return %arg0, %c0_i32, %c0_i32_0 : i32, i32, i32
  }
}

</mosaic_0001>

<llo_original>
// kernel: tpu_custom_call.1
$region0: #{tpu_custom_call.1}
  #allocation0 [shape = 'u32[]', space=smem, size = 0x4, offset = 0x4, fixed_abs, tag = 'smem constant byte address 0x4 - core index']
  #allocation1 [shape = 'u32[72,128]{1,0:T(1,128)}', space=vmem, size = 0x9000, scoped, tag = 'internal scratch']
  #allocation2 [shape = 'f32[32,128]{1,0:T(8,128)}', space=vmem, size = 0x4000, scoped, tag = 'scratch operand']
  %s0 = inlined_call_operand.hbm [shape: f32[16,128], index: 0, kind: input, shape index: {}]
  %s1 = inlined_call_operand.hbm [shape: f32[16,128], index: 1, kind: input, shape index: {}]
  %s2 = inlined_call_operand.hbm [shape: f32[1,8,128], index: 2, kind: output, shape index: {}]
  %s3 = sld [smem:[#allocation0]]
  $region42: #{tpu_custom_call.1} parent=0
    _
  %s5 = ssub.s32 1, %s3
  %s6 = scalar_select 0, %s5, %s3
  $region1: #{tpu_custom_call.1} parent=0
    #allocation3 [shape = 'u8[16384]{0}', space=vmem, size = 0x4000, scoped, tag = 'input window, operand 0, single buffered']
    #allocation4 [shape = 's32[1]{0}', space=sflag, size = 0x4, scoped, tag = 'scoped memory for tpu_custom_call.1']
    #allocation5 [shape = 's32[1]{0}', space=sflag, size = 0x4, scoped, tag = 'scoped memory for tpu_custom_call.1']
    #allocation6 [shape = 'u8[16384]{0}', space=vmem, size = 0x4000, scoped, tag = 'input window, operand 1, single buffered']
    #allocation7 [shape = 's32[1]{0}', space=sflag, size = 0x4, scoped, tag = 'scoped memory for tpu_custom_call.1']
    #allocation8 [shape = 'u8[4096]{0}', space=vmem, size = 0x1000, scoped, tag = 'output window, operand 0, single buffered']
    %7 = vsyncpa [#allocation4], 0
    %8 = vsyncpa [#allocation7], 0
    %9 = vsyncpa [#allocation5], 0
    // Predicated region
    $region2: #{tpu_custom_call.1} parent=1 // pred_check
      _
    $region3: #{tpu_custom_call.1} parent=1 // pred_check_branch
      %11 = sbr.rel (0) target = $region5
    $region4: #{tpu_custom_call.1} parent=1 // pred_region
      %s12 = sadd.s32 0, 0
      %p13 = scmp.lt.s32.totalorder %s12, 0
      %s14 = scalar_select %p13, %s12, 0
      %s15 = smul.u32 4, %s14
      %s16 = ssub.s32 2, %s15
      %s17 = smul.u32 8, %s16
      %s18 = ssub.s32 32, %s17
      %s19 = sshll.u32 %s18, 4
      %20 = vsyncadd [#allocation4], %s19
      %p21 = scmp.ne.s32.totalorder 0, %s17
      %s22 = smul.addr %s15, 8
      %s23 = scalar_lea.hbm %s0, %s22
      %s24 = smul.u32 8, %s16
      %s25 = sshll.u32 %s23, 4
      %s26 = int_to_ptr.hbm [resolvable:$true] %s25
      %s27 = sshll.u32 [#allocation3], 4
      %s28 = int_to_ptr.vmem [resolvable:$true] %s27
      %s29 = sshll.u32 %s24, 4
      %33 = dma.hbm_to_vmem [thread:$0]  (%p21), %s26, %s29, %s28, [#allocation4], 128, 128, 8
    $region5: #{tpu_custom_call.1} parent=1 // pred_fallthru
      _
    // Predicated region
    $region6: #{tpu_custom_call.1} parent=1 // pred_check
      _
    $region7: #{tpu_custom_call.1} parent=1 // pred_check_branch
      %35 = sbr.rel (0) target = $region9
    $region8: #{tpu_custom_call.1} parent=1 // pred_region
      %s36 = sadd.s32 0, 0
      %p37 = scmp.lt.s32.totalorder %s36, 0
      %s38 = scalar_select %p37, %s36, 0
      %s39 = smul.u32 4, %s38
      %s40 = ssub.s32 2, %s39
      %s41 = smul.u32 8, %s40
      %s42 = ssub.s32 32, %s41
      %s43 = sshll.u32 %s42, 4
      %44 = vsyncadd [#allocation7], %s43
      %p45 = scmp.ne.s32.totalorder 0, %s41
      %s46 = smul.addr %s39, 8
      %s47 = scalar_lea.hbm %s1, %s46
      %s48 = smul.u32 8, %s40
      %s49 = sshll.u32 %s47, 4
      %s50 = int_to_ptr.hbm [resolvable:$true] %s49
      %s51 = sshll.u32 [#allocation6], 4
      %s52 = int_to_ptr.vmem [resolvable:$true] %s51
      %s53 = sshll.u32 %s48, 4
      %57 = dma.hbm_to_vmem [thread:$0]  (%p45), %s50, %s53, %s52, [#allocation7], 128, 128, 8
    $region9: #{tpu_custom_call.1} parent=1 // pred_fallthru
      _
    // Predicated region
    $region10: #{tpu_custom_call.1} parent=1 // pred_check
      _
    $region11: #{tpu_custom_call.1} parent=1 // pred_check_branch
      %59 = sbr.rel (0) target = $region13
    $region12: #{tpu_custom_call.1} parent=1 // pred_region
      %61 = dma.done [#allocation4], 512
    $region13: #{tpu_custom_call.1} parent=1 // pred_fallthru
      _
    // Predicated region
    $region14: #{tpu_custom_call.1} parent=1 // pred_check
      _
    $region15: #{tpu_custom_call.1} parent=1 // pred_check_branch
      %63 = sbr.rel (0) target = $region17
    $region16: #{tpu_custom_call.1} parent=1 // pred_region
      %65 = dma.done [#allocation7], 512
    $region17: #{tpu_custom_call.1} parent=1 // pred_fallthru
      _
    %s66 = sadd.s32 0, 0
    %p67 = scmp.lt.s32.totalorder %s66, 0
    %s68 = scalar_select %p67, %s66, 0
    %s69 = smul.u32 4, %s68
    %s70 = ssub.s32 2, %s69
    %s71 = smul.u32 8, %s70
    %s72 = sadd.s32 0, 0
    %p73 = scmp.lt.s32.totalorder %s72, 0
    %s74 = scalar_select %p73, %s72, 0
    %s75 = smul.u32 4, %s74
    %s76 = ssub.s32 2, %s75
    %s77 = smul.u32 8, %s76
    %p78 = scmp.eq.s32.totalorder 0, 0
    // Predicated region
    $region18: #{tpu_custom_call.1} parent=1 // pred_check
      %p79 = pneg %p78
    $region19: #{tpu_custom_call.1} parent=1 // pred_check_branch
      %81 = sbr.rel (%p79) target = $region21
    $region20: #{tpu_custom_call.1} parent=1 // pred_region
      %82 = vst [vmem:[#allocation2] sm:$0xff] 0.0
      %83 = vst [vmem:[#allocation2 + $0x8] sm:$0xff] 0.0
      %84 = vst [vmem:[#allocation2 + $0x10] sm:$0xff] 0.0
      %85 = vst [vmem:[#allocation2 + $0x18] sm:$0xff] 0.0
    $region21: #{tpu_custom_call.1} parent=1 // pred_fallthru
      _
    %v86 = vld [vmem:[#allocation3] sm:$0xff]
    %v87 = vld [vmem:[#allocation3 + $0x8] sm:$0xff]
    %v88 = vld [vmem:[#allocation3 + $0x10] sm:$0xff]
    %v89 = vld [vmem:[#allocation3 + $0x18] sm:$0xff]
    %v90 = vld [vmem:[#allocation6] sm:$0xff]
    %v91 = vld [vmem:[#allocation6 + $0x8] sm:$0xff]
    %v92 = vld [vmem:[#allocation6 + $0x10] sm:$0xff]
    %v93 = vld [vmem:[#allocation6 + $0x18] sm:$0xff]
    %v94 = vsub.f32 %v86, %v90
    %v95 = vsub.f32 %v87, %v91
    %v96 = vsub.f32 %v88, %v92
    %v97 = vsub.f32 %v89, %v93
    %v98 = vand.u32 2147483647, %v94
    %v99 = vand.u32 2147483647, %v95
    %v100 = vand.u32 2147483647, %v96
    %v101 = vand.u32 2147483647, %v97
    %s102 = sadd.s32 0, 0
    %s103 = smul.u32 %s102, 32
    %s104 = sadd.s32 %s103, 32
    %p105 = scmp.le.s32.totalorder %s104, 16
    // Predicated region
    $region22: #{tpu_custom_call.1} parent=1 // pred_check
      %p106 = pneg %p105
    $region23: #{tpu_custom_call.1} parent=1 // pred_check_branch
      %108 = sbr.rel (%p106) target = $region25
    $region24: #{tpu_custom_call.1} parent=1 // pred_region
      %v109 = vld [vmem:[#allocation2] sm:$0xff]
      %v110 = vld [vmem:[#allocation2 + $0x8] sm:$0xff]
      %v111 = vld [vmem:[#allocation2 + $0x10] sm:$0xff]
      %v112 = vld [vmem:[#allocation2 + $0x18] sm:$0xff]
      %v113 = vadd.f32 %v98, 0.0
      %v114 = vadd.f32 %v99, 0.0
      %v115 = vadd.f32 %v100, 0.0
      %v116 = vadd.f32 %v101, 0.0
      %v117 = vadd.f32 %v109, %v113
      %v118 = vadd.f32 %v110, %v114
      %v119 = vadd.f32 %v111, %v115
      %v120 = vadd.f32 %v112, %v116
      %121 = vst [vmem:[#allocation2] sm:$0xff] %v117
      %122 = vst [vmem:[#allocation2 + $0x8] sm:$0xff] %v118
      %123 = vst [vmem:[#allocation2 + $0x10] sm:$0xff] %v119
      %124 = vst [vmem:[#allocation2 + $0x18] sm:$0xff] %v120
    $region25: #{tpu_custom_call.1} parent=1 // pred_fallthru
      _
    %p125 = scmp.gt.s32.totalorder %s104, 16
    // Predicated region
    $region26: #{tpu_custom_call.1} parent=1 // pred_check
      %p126 = pneg %p125
    $region27: #{tpu_custom_call.1} parent=1 // pred_check_branch
      %128 = sbr.rel (%p126) target = $region29
    $region28: #{tpu_custom_call.1} parent=1 // pred_region
      %s129 = ssub.s32 16, %s103
      %v130 = vlaneseq
      %v131 = vshrl.u32 %v130, 7
      %v132 = vadd.s32 %v131, 8
      %v133 = vadd.s32 %v131, 16
      %v134 = vadd.s32 %v131, 24
      %v135 = vstv %s129
      %vm136 = vcmp.lt.s32.totalorder %v131, %v135
      %vm137 = vcmp.lt.s32.totalorder %v132, %v135
      %vm138 = vcmp.lt.s32.totalorder %v133, %v135
      %vm139 = vcmp.lt.s32.totalorder %v134, %v135
      %v140 = vsel %vm136, %v98, 0.0
      %v141 = vsel %vm137, %v99, 0.0
      %v142 = vsel %vm138, %v100, 0.0
      %v143 = vsel %vm139, %v101, 0.0
      %v144 = vld [vmem:[#allocation2] sm:$0xff]
      %v145 = vld [vmem:[#allocation2 + $0x8] sm:$0xff]
      %v146 = vld [vmem:[#allocation2 + $0x10] sm:$0xff]
      %v147 = vld [vmem:[#allocation2 + $0x18] sm:$0xff]
      %v148 = vadd.f32 %v140, 0.0
      %v149 = vadd.f32 %v141, 0.0
      %v150 = vadd.f32 %v142, 0.0
      %v151 = vadd.f32 %v143, 0.0
      %v152 = vadd.f32 %v144, %v148
      %v153 = vadd.f32 %v145, %v149
      %v154 = vadd.f32 %v146, %v150
      %v155 = vadd.f32 %v147, %v151
      %156 = vst [vmem:[#allocation2] sm:$0xff] %v152
      %157 = vst [vmem:[#allocation2 + $0x8] sm:$0xff] %v153
      %158 = vst [vmem:[#allocation2 + $0x10] sm:$0xff] %v154
      %159 = vst [vmem:[#allocation2 + $0x18] sm:$0xff] %v155
    $region29: #{tpu_custom_call.1} parent=1 // pred_fallthru
      _
    // Predicated region
    $region30: #{tpu_custom_call.1} parent=1 // pred_check
      %p160 = pneg %p78
    $region31: #{tpu_custom_call.1} parent=1 // pred_check_branch
      %162 = sbr.rel (%p160) target = $region33
    $region32: #{tpu_custom_call.1} parent=1 // pred_region
      %v163 = vld [vmem:[#allocation2] sm:$0xff]
      %v164 = vld [vmem:[#allocation2 + $0x8] sm:$0xff]
      %v165 = vld [vmem:[#allocation2 + $0x10] sm:$0xff]
      %v166 = vld [vmem:[#allocation2 + $0x18] sm:$0xff]
      %v167 = vadd.f32 %v163, %v164
      %v168 = vadd.f32 %v167, %v165
      %v169 = vadd.f32 %v168, %v166
      %170 = vst [vmem:[#allocation8] sm:$0xff] %v169
    $region33: #{tpu_custom_call.1} parent=1 // pred_fallthru
      _
    // Predicated region
    $region34: #{tpu_custom_call.1} parent=1 // pred_check
      _
    $region35: #{tpu_custom_call.1} parent=1 // pred_check_branch
      %172 = sbr.rel (0) target = $region37
    $region36: #{tpu_custom_call.1} parent=1 // pred_region
      %174 = vsyncadd [#allocation5], 0
      %s176 = sshll.u32 [#allocation8], 4
      %s177 = int_to_ptr.vmem [resolvable:$true] %s176
      %s178 = sshll.u32 %s2, 4
      %s179 = int_to_ptr.hbm [resolvable:$true] %s178
      %181 = dma.vmem_to_hbm [thread:$0]  %s177, 128, %s179, [#allocation5]
    $region37: #{tpu_custom_call.1} parent=1 // pred_fallthru
      _
    // Predicated region
    $region38: #{tpu_custom_call.1} parent=1 // pred_check
      _
    $region39: #{tpu_custom_call.1} parent=1 // pred_check_branch
      %183 = sbr.rel (0) target = $region41
    $region40: #{tpu_custom_call.1} parent=1 // pred_region
      %185 = dma.done [#allocation5], 128
    $region41: #{tpu_custom_call.1} parent=1 // pred_fallthru
      _
    %186 = vsyncpa [#allocation4], 1
    %187 = vsyncpa [#allocation7], 1
    %188 = vsyncpa [#allocation5], 1

</llo_original>
